<compile_context>
chip_gen: v6e
topology: v6e:2x2x1
jax: 0.10.0
libtpu: 0.0.40
codegen_flags: <defaults>
</compile_context>

<pallas_src>
import jax
import jax.numpy as jnp
from jax.experimental import pallas as pl
from jax.experimental.pallas import tpu as pltpu

EPS = 1e-5  # nn.BatchNorm2d default


def _round_up(x, m):
    return ((x + m - 1) // m) * m


def _round_down(x, m):
    return (x // m) * m


def _vmem_capacity_bytes():
    try:
        return int(pltpu.get_tpu_info().vmem_capacity_bytes)
    except Exception:
        return 64 << 20  # conservative fallback (v7x per-TensorCore VMEM)


def _vmem_limit(need_bytes, cap_bytes):
    # Explicit scoped-VMEM limit with headroom, never above ~3/4 of physical.
    return int(min(0.75 * cap_bytes, max(2 * need_bytes, 32 << 20)))


# ---------------------------------------------------------------------------
# Pass 1: augmented Gram accumulation  G_aug += xa_tile^T @ xa_tile.
# Output block index is constant across the grid -> VMEM-resident accumulator.
# Only reads the tiny (M, Cin+1) input; no wide matmul, no z intermediate.
# ---------------------------------------------------------------------------
def gram_kernel(xat_ref, xa_ref, gram_ref):
    @pl.when(pl.program_id(0) == 0)
    def _():
        gram_ref[...] = jnp.zeros_like(gram_ref)

    gram_ref[...] += jnp.dot(xat_ref[...], xa_ref[...],
                             preferred_element_type=jnp.float32)


# ---------------------------------------------------------------------------
# Pass 2: recompute z per tile, apply fused affine (scale/shift pre-tiled to the
# full 4*Cout_p width in the wrapper) + ReLU; single unmasked full-width store,
# cast to the output dtype (bf16 halves the dominant HBM write).
# ---------------------------------------------------------------------------
def apply_kernel(x_ref, w_ref, scale_ref, shift_ref, o_ref):
    z = jnp.dot(x_ref[...], w_ref[...], preferred_element_type=jnp.float32)
    y = jnp.maximum(z * scale_ref[...] + shift_ref[...], 0.0)
    o_ref[...] = y.astype(o_ref.dtype)


def upsamples_forward(x_nchw, weight, bias, gamma, beta, *,
                      block_m=None, block_m_stats=None,
                      use_bf16_inputs=False, out_dtype=jnp.float32):
    """Forward of ConvTranspose2d(k=2,s=2) + BatchNorm2d(train) + ReLU.

    weight: (Cin, Cout, 2, 2) as in nn.ConvTranspose2d; x_nchw: (N, Cin, H, W).
    block_m / block_m_stats: optional tile-row overrides (auto-derived from the
      channel width, output dtype and per-generation VMEM capacity otherwise).
    use_bf16_inputs: cast x/w to bf16 for the pass-2 MXU matmul (recommended on
      v5e); BN statistics and the FMA epilogue stay f32 either way.
    out_dtype: pass-2 store dtype; bf16 halves the dominant HBM write traffic.
    """
    n, cin, h, w = x_nchw.shape
    cout = weight.shape[1]
    m = n * h * w
    del bias  # conv bias only shifts the batch mean -> cancels in train-mode BN

    # --- pad channels so 4*cout_p is a multiple of 128 (lane-dense stores) ---
    cout_p = _round_up(cout, 32)
    pad_c = cout_p - cout
    if pad_c:
        weight = jnp.pad(weight, ((0, 0), (0, pad_c), (0, 0), (0, 0)))
        gamma = jnp.pad(gamma, (0, pad_c), constant_values=1.0)
        beta = jnp.pad(beta, (0, pad_c))
    c4 = 4 * cout_p

    # --- layout glue (see TODO(synk) at top): one transpose each way ---
    x_flat = jnp.transpose(x_nchw, (0, 2, 3, 1)).reshape(m, cin)   # (M, Cin)
    # (Cin, Cout_p, kh, kw) -> (Cin, kh, kw, Cout_p) -> (Cin, 4*Cout_p)
    w_mat = jnp.transpose(weight, (0, 2, 3, 1)).reshape(cin, c4)

    vmem_cap = _vmem_capacity_bytes()
    compute_dtype = jnp.bfloat16 if use_bf16_inputs else jnp.float32
    in_itm = jnp.dtype(compute_dtype).itemsize
    out_itm = jnp.dtype(out_dtype).itemsize

    # =================== pass 1: augmented Gram statistics ===================
    ca = _round_up(cin + 1, 8)                      # [x | 1 | 0-pad] columns
    xa = jnp.concatenate(
        [x_flat.astype(jnp.float32), jnp.ones((m, 1), jnp.float32)], axis=1)
    if block_m_stats is None:
        tm1 = (2 << 20) // (ca * 4)                 # ~2 MiB of xa per tile
    else:
        tm1 = block_m_stats
    tm1 = max(256, min(_round_down(tm1, 256), _round_up(m, 256)))
    m_pad1 = _round_up(m, tm1)
    xa = jnp.pad(xa, ((0, m_pad1 - m), (0, ca - cin - 1)))   # zero rows/cols: no
    xat = xa.T                                                # effect on stats
    grid1 = m_pad1 // tm1

    need1 = 2 * 2 * tm1 * ca * 4 + ca * ca * 4
    gram = pl.pallas_call(
        gram_kernel,
        out_shape=jax.ShapeDtypeStruct((ca, ca), jnp.float32),
        grid=(grid1,),
        in_specs=[
            pl.BlockSpec((ca, tm1), lambda i: (0, i)),
            pl.BlockSpec((tm1, ca), lambda i: (i, 0)),
        ],
        out_specs=pl.BlockSpec((ca, ca), lambda i: (0, 0)),
        compiler_params=pltpu.CompilerParams(
            dimension_semantics=("arbitrary",),
            vmem_limit_bytes=_vmem_limit(need1, vmem_cap)),
        cost_estimate=pl.CostEstimate(
            flops=int(2 * m_pad1 * ca * ca),
            transcendentals=0,
            bytes_accessed=int(2 * m_pad1 * ca * 4 + ca * ca * 4)),
    )(xat, xa)

    # --- BN math on tiny per-channel stats, in the wrapper in f32 ---
    g = gram[:cin, :cin]                 # x^T x            (Cin, Cin)
    s = gram[cin, :cin]                  # column sums of x (Cin,)
    count = 4.0 * m                      # elements per output channel
    col_sum = s @ w_mat                                       # sum(z) per column
    col_sq = jnp.einsum("kj,kl,lj->j", w_mat, g, w_mat)       # sum(z^2) per col
    ch_sum = col_sum.reshape(4, cout_p).sum(axis=0)
    ch_sq = col_sq.reshape(4, cout_p).sum(axis=0)
    mean_z = ch_sum / count
    var = jnp.maximum(ch_sq / count - mean_z * mean_z, 0.0)   # clamp cancellation
    inv = jax.lax.rsqrt(var + EPS)
    scale = gamma * inv                                       # (Cout_p,)
    # y = z + bias; (y - mean_y)*scale + beta == z*scale + (beta - mean_z*scale)
    shift = beta - mean_z * scale
    scale4 = jnp.tile(scale[None, :], (1, 4))                 # (1, 4*Cout_p)
    shift4 = jnp.tile(shift[None, :], (1, 4))

    # =================== pass 2: streamed matmul + affine + ReLU ==============
    if block_m is None:
        # >= ~2 MiB of output per tile (per-step overhead ~0.35 us), >= 2048 rows
        tm2 = max(2048, (2 << 20) // max(c4 * out_itm, 1))
    else:
        tm2 = block_m
    # VMEM model: 2x output tile + f32 z intermediate + 2x x tile + 2x w + scale.
    budget = int(0.6 * vmem_cap)
    fixed = 2 * cin * c4 * in_itm + 4 * c4 * 4
    per_row = 2 * c4 * out_itm + c4 * 4 + 2 * cin * in_itm
    tm_cap = max(8, (budget - fixed) // per_row)
    tm2 = max(8, _round_up(min(tm2, tm_cap, m), 8))
    m_pad2 = _round_up(m, tm2)
    grid2 = m_pad2 // tm2

    x_k = x_flat.astype(compute_dtype)
    if m_pad2 != m:
        x_k = jnp.pad(x_k, ((0, m_pad2 - m), (0, 0)))
    w_k = w_mat.astype(compute_dtype)

    need2 = fixed + tm2 * per_row + (1 << 20)
    matmul_flops = 2 * m_pad2 * cin * c4
    out_flat = pl.pallas_call(
        apply_kernel,
        out_shape=jax.ShapeDtypeStruct((m_pad2, c4), out_dtype),
        grid=(grid2,),
        in_specs=[
            pl.BlockSpec((tm2, cin), lambda i: (i, 0)),
            pl.BlockSpec((cin, c4), lambda i: (0, 0)),
            pl.BlockSpec((1, c4), lambda i: (0, 0)),
            pl.BlockSpec((1, c4), lambda i: (0, 0)),
        ],
        out_specs=pl.BlockSpec((tm2, c4), lambda i: (i, 0)),
        compiler_params=pltpu.CompilerParams(
            dimension_semantics=("parallel",),
            vmem_limit_bytes=_vmem_limit(need2, vmem_cap)),
        cost_estimate=pl.CostEstimate(
            flops=int(matmul_flops + 3 * m_pad2 * c4),
            transcendentals=0,
            bytes_accessed=int(m_pad2 * cin * in_itm + cin * c4 * in_itm
                               + m_pad2 * c4 * out_itm + 2 * c4 * 4)),
    )(x_k, w_k, scale4, shift4)

    # --- scatter (M, 4*Cout_p) -> (N, Cout, 2H, 2W); plain XLA (see TODO) ---
    y = out_flat[:m].reshape(n, h, w, 2, 2, cout_p)[..., :cout]
    y = jnp.transpose(y, (0, 5, 1, 3, 2, 4)).reshape(n, cout, 2 * h, 2 * w)
    return y


def reference_forward(x_nchw, weight, bias, gamma, beta):
    """Plain-JAX reference of the PyTorch forward (train-mode BN)."""
    n, cin, h, w = x_nchw.shape
    cout = weight.shape[1]
    y = jnp.einsum("nihw,iokl->nohkwl", x_nchw, weight).reshape(n, cout, 2 * h, 2 * w)
    y = y + bias[None, :, None, None]
    mean = jnp.mean(y, axis=(0, 2, 3), keepdims=True)
    var = jnp.var(y, axis=(0, 2, 3), keepdims=True)
    y = (y - mean) / jnp.sqrt(var + EPS)
    y = y * gamma[None, :, None, None] + beta[None, :, None, None]
    return jnp.maximum(y, 0.0)


if __name__ == "__main__":
    N, CIN, COUT, H, W = 2, 4, 32, 16, 16   # 4*COUT = 128 -> lane-dense output

    key = jax.random.PRNGKey(0)
    k_x, k_w, k_b, k_g, k_be = jax.random.split(key, 5)
    x = jax.random.normal(k_x, (N, CIN, H, W), jnp.float32)
    weight = 0.1 * jax.random.normal(k_w, (CIN, COUT, 2, 2), jnp.float32)
    bias = 0.1 * jax.random.normal(k_b, (COUT,), jnp.float32)
    gamma = 1.0 + 0.1 * jax.random.normal(k_g, (COUT,), jnp.float32)
    beta = 0.1 * jax.random.normal(k_be, (COUT,), jnp.float32)

    ref = reference_forward(x, weight, bias, gamma, beta)

    # f32 path; small explicit tiles force multi-step grids in BOTH passes so
    # the Gram accumulator and the pipelined apply pass are exercised.
    out = upsamples_forward(x, weight, bias, gamma, beta,
                            block_m=256, block_m_stats=256)
    out = jax.block_until_ready(out)
    assert out.shape == (N, COUT, 2 * H, 2 * W), out.shape
    err = float(jnp.max(jnp.abs(out - ref)))
    assert jnp.allclose(out, ref, atol=1e-4, rtol=1e-4), err

    # bf16 fast path (bf16 MXU inputs + bf16 store), auto-derived tiles.
    out_bf16 = upsamples_forward(x, weight, bias, gamma, beta,
                                 use_bf16_inputs=True, out_dtype=jnp.bfloat16)
    out_bf16 = jax.block_until_ready(out_bf16)
    assert out_bf16.dtype == jnp.bfloat16
    err_bf16 = float(jnp.max(jnp.abs(out_bf16.astype(jnp.float32) - ref)))
    assert bool(jnp.all(jnp.isfinite(out_bf16.astype(jnp.float32))))
    assert err_bf16 < 0.25, err_bf16

    print("KERNEL_OK")
</pallas_src>

<mosaic_0001>
module attributes {stable_mosaic.version = 11 : i64} {
  func.func @gram_kernel(%arg0: i32, %arg1: memref<8x256xf32, #tpu.memory_space<vmem>>, %arg2: memref<256x8xf32, #tpu.memory_space<vmem>>, %arg3: memref<8x8xf32, #tpu.memory_space<vmem>>) attributes {dimension_semantics = [#tpu.dimension_semantics<arbitrary>], iteration_bounds = array<i64: 2>, scalar_prefetch = 0 : i64, scratch_operands = 0 : i64, tpu.core_type = #tpu.core_type<tc>, window_params = [{transform_indices = @transform_0, window_bounds = array<i64: 8, 256>}, {transform_indices = @transform_1, window_bounds = array<i64: 256, 8>}, {pipeline_mode = #tpu.pipeline_mode<synchronous>, transform_indices = @transform_2, window_bounds = array<i64: 8, 8>}]} {
    %c0_i32 = arith.constant 0 : i32
    %0 = arith.cmpi eq, %arg0, %c0_i32 : i32
    %1 = arith.extui %0 : i1 to i32
    %c0_i32_0 = arith.constant 0 : i32
    %2 = arith.cmpi ne, %1, %c0_i32_0 : i32
    scf.if %2 {
      %cst_8 = arith.constant 0.000000e+00 : f32
      %9 = vector.broadcast %cst_8 : f32 to vector<8x8xf32>
      %c0_9 = arith.constant 0 : index
      %c0_10 = arith.constant 0 : index
      %10 = vector.load %arg3[%c0_9, %c0_10] : memref<8x8xf32, #tpu.memory_space<vmem>>, vector<8x8xf32>
      tpu.vector_store %arg3[%c0_9, %c0_10], %9 {strides = array<i32>} : memref<8x8xf32, #tpu.memory_space<vmem>>, vector<8x8xf32>,
    } else {
    }
    %c0 = arith.constant 0 : index
    %c0_1 = arith.constant 0 : index
    %3 = vector.load %arg3[%c0, %c0_1] : memref<8x8xf32, #tpu.memory_space<vmem>>, vector<8x8xf32>
    %c0_2 = arith.constant 0 : index
    %c0_3 = arith.constant 0 : index
    %4 = vector.load %arg1[%c0_2, %c0_3] : memref<8x256xf32, #tpu.memory_space<vmem>>, vector<8x256xf32>
    %c0_4 = arith.constant 0 : index
    %c0_5 = arith.constant 0 : index
    %5 = vector.load %arg2[%c0_4, %c0_5] : memref<256x8xf32, #tpu.memory_space<vmem>>, vector<256x8xf32>
    %cst = arith.constant dense<0.000000e+00> : vector<8x8xf32>
    %6 = tpu.matmul %4, %5, %cst {dimension_numbers = #tpu.dot_dimension_numbers<[1], [0], [0], [1], [0, 0, 1, 1], [], []>} : vector<8x256xf32>, vector<256x8xf32>, vector<8x8xf32> -> vector<8x8xf32>
    %7 = arith.addf %3, %6 : vector<8x8xf32>
    %c0_6 = arith.constant 0 : index
    %c0_7 = arith.constant 0 : index
    %8 = vector.load %arg3[%c0_6, %c0_7] : memref<8x8xf32, #tpu.memory_space<vmem>>, vector<8x8xf32>
    tpu.vector_store %arg3[%c0_6, %c0_7], %7 {strides = array<i32>} : memref<8x8xf32, #tpu.memory_space<vmem>>, vector<8x8xf32>,
    return
  }
  func.func @transform_0(%arg0: i32) -> (i32, i32) {
    %c0_i32 = arith.constant 0 : i32
    %c0_i32_0 = arith.constant 0 : i32
    return %c0_i32, %arg0 : i32, i32
  }
  func.func @transform_1(%arg0: i32) -> (i32, i32) {
    %c0_i32 = arith.constant 0 : i32
    %c0_i32_0 = arith.constant 0 : i32
    return %arg0, %c0_i32 : i32, i32
  }
  func.func @transform_2(%arg0: i32) -> (i32, i32) {
    %c0_i32 = arith.constant 0 : i32
    %c0_i32_0 = arith.constant 0 : i32
    %c0_i32_1 = arith.constant 0 : i32
    return %c0_i32, %c0_i32_0 : i32, i32
  }
}

</mosaic_0001>

<llo_original>
// kernel: tpu_custom_call.1
$region0: #{tpu_custom_call.1}
  #allocation0 [shape = 'u32[]', space=smem, size = 0x4, offset = 0x4, fixed_abs, tag = 'smem constant byte address 0x4 - core index']
  #allocation1 [shape = 'u32[144,128]{1,0:T(1,128)}', space=vmem, size = 0x12000, scoped, tag = 'internal scratch']
  %s0 = inlined_call_operand.vmem [shape: f32[8,512], index: 0, kind: input, shape index: {}]
  %s1 = inlined_call_operand.vmem [shape: f32[512,8], index: 1, kind: input, shape index: {}]
  %s2 = inlined_call_operand.hbm [shape: f32[8,8], index: 2, kind: output, shape index: {}]
  %s3 = sld [smem:[#allocation0]]
  $region45: #{tpu_custom_call.1} parent=0
    _
  %s5 = ssub.s32 1, %s3
  %s6 = scalar_select 0, %s5, %s3
  $region1: #{tpu_custom_call.1} parent=0
    #allocation2 [shape = 'u8[4096]{0}', space=vmem, size = 0x1000, scoped, tag = 'output window, operand 0, single buffered']
    #allocation3 [shape = 's32[2]{0}', space=sflag, size = 0x8, scoped, tag = 'scoped memory for tpu_custom_call.1']
    %7 = vsyncpa [#allocation3], 0
    loop: start=0, step=1, limit=4
    $region2: #{tpu_custom_call.1} parent=1 // loop_pre_header
      _
    $region3: #{tpu_custom_call.1} parent=1 // loop_header
      %s9 = sphi 0, %s13
      %p10 = scmp.ge.s32.totalorder %s9, 4
      %s19 = sphi 0, %s21
      %s22 = sphi 0, %s19
      %s23 = sphi 0, %s22
      %s39 = sphi 0, %s23
      %s45 = sphi 0, %s47
      %s48 = sphi 0, %s45
      %s49 = sphi 0, %s48
      %s65 = sphi 0, %s49
      %s69 = sphi 0, %s69
      %s71 = sphi 0, %s69
      %s72 = sphi 0, %s71
      %s86 = sphi 0, %s72
    $region4: #{tpu_custom_call.1} parent=1 // loop_header_branch
      %12 = sbr.rel (%p10) target = $region8
    $region5: #{tpu_custom_call.1} parent=1 // loop_body
      %s14 = ssub.s32 %s9, 1
      %s15 = ssub.s32 %s9, 2
      %s16 = sadd.s32 %s9, 1
      %s17 = ssub.s32 %s9, %s16
      %p18 = scmp.eq.s32.totalorder %s17, 0
      %s20 = sadd.s32 %s19, 1
      %s21 = scalar_select %p18, %s19, %s20
      %p24 = pneg %p18
      %p25 = scmp.eq.s32.totalorder %s9, 1
      %p26 = por %p24, %p25
      %p27 = scmp.ne.s32.totalorder %s19, %s22
      %p28 = scmp.eq.s32.totalorder %s9, 0
      %p29 = por %p27, %p28
      %p30 = scmp.ne.s32.totalorder %s19, %s22
      %p31 = scmp.eq.s32.totalorder %s14, 1
      %p32 = por %p30, %p31
      %p33 = scmp.ne.s32.totalorder %s22, %s23
      %p34 = scmp.eq.s32.totalorder %s14, 0
      %p35 = por %p33, %p34
      %p36 = scmp.ne.s32.totalorder %s22, %s23
      %p37 = scmp.eq.s32.totalorder %s15, 1
      %p38 = por %p36, %p37
      %p40 = scmp.ne.s32.totalorder %s23, %s39
      %p41 = scmp.eq.s32.totalorder %s15, 0
      %p42 = por %p40, %p41
      %s43 = ssub.s32 %s9, %s16
      %p44 = scmp.eq.s32.totalorder %s43, 0
      %s46 = sadd.s32 %s45, 1
      %s47 = scalar_select %p44, %s45, %s46
      %p50 = pneg %p44
      %p51 = scmp.eq.s32.totalorder %s9, 1
      %p52 = por %p50, %p51
      %p53 = scmp.ne.s32.totalorder %s45, %s48
      %p54 = scmp.eq.s32.totalorder %s9, 0
      %p55 = por %p53, %p54
      %p56 = scmp.ne.s32.totalorder %s45, %s48
      %p57 = scmp.eq.s32.totalorder %s14, 1
      %p58 = por %p56, %p57
      %p59 = scmp.ne.s32.totalorder %s48, %s49
      %p60 = scmp.eq.s32.totalorder %s14, 0
      %p61 = por %p59, %p60
      %p62 = scmp.ne.s32.totalorder %s48, %s49
      %p63 = scmp.eq.s32.totalorder %s15, 1
      %p64 = por %p62, %p63
      %p66 = scmp.ne.s32.totalorder %s49, %s65
      %p67 = scmp.eq.s32.totalorder %s15, 0
      %p68 = por %p66, %p67
      %s70 = sadd.s32 %s69, 1
      %p73 = scmp.eq.s32.totalorder %s9, 1
      %p74 = scmp.ne.s32.totalorder %s69, %s71
      %p75 = scmp.eq.s32.totalorder %s9, 0
      %p76 = por %p74, %p75
      %p77 = scmp.ne.s32.totalorder %s69, %s71
      %p78 = scmp.eq.s32.totalorder %s14, 1
      %p79 = por %p77, %p78
      %p80 = scmp.ne.s32.totalorder %s71, %s72
      %p81 = scmp.eq.s32.totalorder %s14, 0
      %p82 = por %p80, %p81
      %p83 = scmp.ne.s32.totalorder %s71, %s72
      %p84 = scmp.eq.s32.totalorder %s15, 1
      %p85 = por %p83, %p84
      %p87 = scmp.ne.s32.totalorder %s72, %s86
      %p88 = scmp.eq.s32.totalorder %s15, 0
      %p89 = por %p87, %p88
      %p90 = scmp.le.s32.totalorder 1, %s9
      %p91 = scmp.lt.s32.totalorder %s9, 3
      %p92 = pnand %p90, %p91
      %p93 = pneg %p92
      // Predicated region
      $region9: #{tpu_custom_call.1} parent=5 // pred_check
        _
      $region10: #{tpu_custom_call.1} parent=5 // pred_check_branch
        %95 = sbr.rel (%p92) target = $region12
      $region11: #{tpu_custom_call.1} parent=5 // pred_region
        %s96 = ssub.s32 %s9, 1
      $region12: #{tpu_custom_call.1} parent=5 // pred_fallthru
        _
      %p97 = scmp.lt.s32.totalorder %s9, 2
      // Predicated region
      $region13: #{tpu_custom_call.1} parent=5 // pred_check
        %p98 = pneg %p97
      $region14: #{tpu_custom_call.1} parent=5 // pred_check_branch
        %100 = sbr.rel (%p98) target = $region16
      $region15: #{tpu_custom_call.1} parent=5 // pred_region
        // Predicated region
        $region17: #{tpu_custom_call.1} parent=15 // pred_check
          %p101 = pneg %p29
        $region18: #{tpu_custom_call.1} parent=15 // pred_check_branch
          %103 = sbr.rel (%p101) target = $region20
        $region19: #{tpu_custom_call.1} parent=15 // pred_region
          %s104 = smul.u32 2, %s9
          %p105 = scmp.lt.s32.totalorder %s104, 3
          %s106 = scalar_select %p105, %s104, 3
          %s107 = smul.addr %s106, 8
          %s108 = scalar_lea.vmem %s0, %s107
          %s109 = smul.u32 2, %s9
        $region20: #{tpu_custom_call.1} parent=15 // pred_fallthru
          _
        // Predicated region
        $region21: #{tpu_custom_call.1} parent=15 // pred_check
          %p110 = pneg %p55
        $region22: #{tpu_custom_call.1} parent=15 // pred_check_branch
          %112 = sbr.rel (%p110) target = $region24
        $region23: #{tpu_custom_call.1} parent=15 // pred_region
          %s113 = smul.u32 32, %s9
          %p114 = scmp.lt.s32.totalorder %s113, 63
          %s115 = scalar_select %p114, %s113, 63
          %s116 = smul.addr %s115, 8
          %s117 = scalar_lea.vmem %s1, %s116
          %s118 = smul.u32 32, %s9
        $region24: #{tpu_custom_call.1} parent=15 // pred_fallthru
          _
      $region16: #{tpu_custom_call.1} parent=5 // pred_fallthru
        _
      %p119 = scmp.le.s32.totalorder 1, %s9
      %p120 = scmp.lt.s32.totalorder %s9, 3
      %p121 = pnand %p119, %p120
      %p122 = pneg %p121
      // Predicated region
      $region25: #{tpu_custom_call.1} parent=5 // pred_check
        _
      $region26: #{tpu_custom_call.1} parent=5 // pred_check_branch
        %124 = sbr.rel (%p121) target = $region28
      $region27: #{tpu_custom_call.1} parent=5 // pred_region
        %s125 = ssub.s32 %s9, 1
        %s126 = smul.u32 2, %s14
        %p127 = scmp.lt.s32.totalorder %s126, 3
        %s128 = scalar_select %p127, %s126, 3
        %s129 = smul.addr %s128, 8
        %s130 = scalar_lea.vmem %s0, %s129
        %p131 = pneg %p35
        %p132 = pneg %p32
        %s133 = smul.u32 32, %s14
        %p134 = scmp.lt.s32.totalorder %s133, 63
        %s135 = scalar_select %p134, %s133, 63
        %s136 = smul.addr %s135, 8
        %s137 = scalar_lea.vmem %s1, %s136
        %p138 = pneg %p61
        %p139 = pneg %p58
        %p140 = pneg %p82
        %p141 = pneg %p79
        %s142 = smul.u32 2, %s14
        %p143 = scmp.lt.s32.totalorder %s142, 3
        %s144 = scalar_select %p143, %s142, 3
        %s145 = smul.addr %s144, 8
        %s146 = scalar_lea.vmem %s0, %s145
        %s147 = smul.u32 2, %s14
        %s148 = smul.u32 32, %s14
        %p149 = scmp.lt.s32.totalorder %s148, 63
        %s150 = scalar_select %p149, %s148, 63
        %s151 = smul.addr %s150, 8
        %s152 = scalar_lea.vmem %s1, %s151
        %s153 = smul.u32 32, %s14
        %p154 = scmp.eq.s32.totalorder %s14, 0
        // Predicated region
        $region29: #{tpu_custom_call.1} parent=27 // pred_check
          %p155 = pneg %p154
        $region30: #{tpu_custom_call.1} parent=27 // pred_check_branch
          %157 = sbr.rel (%p155) target = $region32
        $region31: #{tpu_custom_call.1} parent=27 // pred_region
          %vm158 = vcmask 64512
          %159 = vst.msk [vmem:[#allocation2] sm:$0xff] %vm158, 0.0
        $region32: #{tpu_custom_call.1} parent=27 // pred_fallthru
          _
        %v160 = vld [vmem:[#allocation2] sm:$0xff]
        %v161 = vld [vmem:[%s146] sm:$0xff]
        %v162 = vld [vmem:[%s146 + $0x8] sm:$0xff]
        %v163 = vld [vmem:[%s152] sm:$0xff]
        %v164 = vld [vmem:[%s152 + $0x8] sm:$0xff]
        %v165 = vld [vmem:[%s152 + $0x10] sm:$0xff]
        %v166 = vld [vmem:[%s152 + $0x18] sm:$0xff]
        %v167 = vld [vmem:[%s152 + $0x20] sm:$0xff]
        %v168 = vld [vmem:[%s152 + $0x28] sm:$0xff]
        %v169 = vld [vmem:[%s152 + $0x30] sm:$0xff]
        %v170 = vld [vmem:[%s152 + $0x38] sm:$0xff]
        %v171 = vld [vmem:[%s152 + $0x40] sm:$0xff]
        %v172 = vld [vmem:[%s152 + $0x48] sm:$0xff]
        %v173 = vld [vmem:[%s152 + $0x50] sm:$0xff]
        %v174 = vld [vmem:[%s152 + $0x58] sm:$0xff]
        %v175 = vld [vmem:[%s152 + $0x60] sm:$0xff]
        %v176 = vld [vmem:[%s152 + $0x68] sm:$0xff]
        %v177 = vld [vmem:[%s152 + $0x70] sm:$0xff]
        %v178 = vld [vmem:[%s152 + $0x78] sm:$0xff]
        %v179 = vld [vmem:[%s152 + $0x80] sm:$0xff]
        %v180 = vld [vmem:[%s152 + $0x88] sm:$0xff]
        %v181 = vld [vmem:[%s152 + $0x90] sm:$0xff]
        %v182 = vld [vmem:[%s152 + $0x98] sm:$0xff]
        %v183 = vld [vmem:[%s152 + $0xa0] sm:$0xff]
        %v184 = vld [vmem:[%s152 + $0xa8] sm:$0xff]
        %v185 = vld [vmem:[%s152 + $0xb0] sm:$0xff]
        %v186 = vld [vmem:[%s152 + $0xb8] sm:$0xff]
        %v187 = vld [vmem:[%s152 + $0xc0] sm:$0xff]
        %v188 = vld [vmem:[%s152 + $0xc8] sm:$0xff]
        %v189 = vld [vmem:[%s152 + $0xd0] sm:$0xff]
        %v190 = vld [vmem:[%s152 + $0xd8] sm:$0xff]
        %v191 = vld [vmem:[%s152 + $0xe0] sm:$0xff]
        %v192 = vld [vmem:[%s152 + $0xe8] sm:$0xff]
        %v193 = vld [vmem:[%s152 + $0xf0] sm:$0xff]
        %v194 = vld [vmem:[%s152 + $0xf8] sm:$0xff]
        %195 = vmatprep.subr.mxu0 0.0
        %196 = vmatpush1.msra.mxu0 %v178
        %197 = vmatprep.subr.mxu0 0.0
        %198 = vmatpush1.msra.mxu0 %v177
        %199 = vmatprep.subr.mxu0 0.0
        %200 = vmatpush1.msra.mxu0 %v176
        %201 = vmatprep.subr.mxu0 0.0
        %202 = vmatpush1.msra.mxu0 %v175
        %203 = vmatprep.subr.mxu0 0.0
        %204 = vmatpush1.msra.mxu0 %v174
        %205 = vmatprep.subr.mxu0 0.0
        %206 = vmatpush1.msra.mxu0 %v173
        %207 = vmatprep.subr.mxu0 0.0
        %208 = vmatpush1.msra.mxu0 %v172
        %209 = vmatprep.subr.mxu0 0.0
        %210 = vmatpush1.msra.mxu0 %v171
        %211 = vmatprep.subr.mxu0 0.0
        %212 = vmatpush1.msra.mxu0 %v170
        %213 = vmatprep.subr.mxu0 0.0
        %214 = vmatpush1.msra.mxu0 %v169
        %215 = vmatprep.subr.mxu0 0.0
        %216 = vmatpush1.msra.mxu0 %v168
        %217 = vmatprep.subr.mxu0 0.0
        %218 = vmatpush1.msra.mxu0 %v167
        %219 = vmatprep.subr.mxu0 0.0
        %220 = vmatpush1.msra.mxu0 %v166
        %221 = vmatprep.subr.mxu0 0.0
        %222 = vmatpush1.msra.mxu0 %v165
        %223 = vmatprep.subr.mxu0 0.0
        %224 = vmatpush1.msra.mxu0 %v164
        %225 = vmatprep.subr.mxu0 0.0
        %226 = vmatpush1.msra.mxu0 %v163
        %227 = vmatprep.subr.mxu0 0.0
        %228 = vmatpush2.msra.mxu0 %v194
        %229 = vmatprep.subr.mxu0 0.0
        %230 = vmatpush2.msra.mxu0 %v193
        %231 = vmatprep.subr.mxu0 0.0
        %232 = vmatpush2.msra.mxu0 %v192
        %233 = vmatprep.subr.mxu0 0.0
        %234 = vmatpush2.msra.mxu0 %v191
        %235 = vmatprep.subr.mxu0 0.0
        %236 = vmatpush2.msra.mxu0 %v190
        %237 = vmatprep.subr.mxu0 0.0
        %238 = vmatpush2.msra.mxu0 %v189
        %239 = vmatprep.subr.mxu0 0.0
        %240 = vmatpush2.msra.mxu0 %v188
        %241 = vmatprep.subr.mxu0 0.0
        %242 = vmatpush2.msra.mxu0 %v187
        %243 = vmatprep.subr.mxu0 0.0
        %244 = vmatpush2.msra.mxu0 %v186
        %245 = vmatprep.subr.mxu0 0.0
        %246 = vmatpush2.msra.mxu0 %v185
        %247 = vmatprep.subr.mxu0 0.0
        %248 = vmatpush2.msra.mxu0 %v184
        %249 = vmatprep.subr.mxu0 0.0
        %250 = vmatpush2.msra.mxu0 %v183
        %251 = vmatprep.subr.mxu0 0.0
        %252 = vmatpush2.msra.mxu0 %v182
        %253 = vmatprep.subr.mxu0 0.0
        %254 = vmatpush2.msra.mxu0 %v181
        %255 = vmatprep.subr.mxu0 0.0
        %256 = vmatpush2.msra.mxu0 %v180
        %257 = vmatprep.subr.mxu0 0.0
        %258 = vmatpush2.msra.mxu0 %v179
        %259 = vmatprep.mubr.f32.mxu0 %v162
        %260 = vmatmul.mubr.f32.gmra.mxu0 %v161
        %v261 = vpop.f32.mrf.mxu0
        %v262 = vadd.f32 0.0, %v261
        %v263 = vpop.f32.mrf.mxu0
        %264 = vdwg.mxu0
        %v265 = vadd.f32 %v160, %v262
        %vm266 = vcmask 64512
        %267 = vst.msk [vmem:[#allocation2] sm:$0xff] %vm266, %v265
        // Predicated region
        $region33: #{tpu_custom_call.1} parent=27 // pred_check
          %p268 = pneg %p79
        $region34: #{tpu_custom_call.1} parent=27 // pred_check_branch
          %270 = sbr.rel (%p268) target = $region36
        $region35: #{tpu_custom_call.1} parent=27 // pred_region
          %s272 = ssub.s32 128, 128
          %273 = vsyncadd [#allocation3], %s272
          %s275 = sshll.u32 [#allocation2], 4
          %s276 = int_to_ptr.vmem [resolvable:$true] %s275
          %278 = dma.vmem_to_hbm [thread:$0]  %s276, 128, %s2, [#allocation3]
        $region36: #{tpu_custom_call.1} parent=27 // pred_fallthru
          _
        // Predicated region
        $region37: #{tpu_custom_call.1} parent=27 // pred_check
          %p279 = pneg %p79
        $region38: #{tpu_custom_call.1} parent=27 // pred_check_branch
          %281 = sbr.rel (%p279) target = $region40
        $region39: #{tpu_custom_call.1} parent=27 // pred_region
          %282 = dma.done [#allocation3], 128
        $region40: #{tpu_custom_call.1} parent=27 // pred_fallthru
          _
      $region28: #{tpu_custom_call.1} parent=5 // pred_fallthru
        _
      %p283 = scmp.le.s32.totalorder 2, %s9
      // Predicated region
      $region41: #{tpu_custom_call.1} parent=5 // pred_check
        %p284 = pneg %p283
      $region42: #{tpu_custom_call.1} parent=5 // pred_check_branch
        %286 = sbr.rel (%p284) target = $region44
      $region43: #{tpu_custom_call.1} parent=5 // pred_region
        %s287 = ssub.s32 %s9, 2
      $region44: #{tpu_custom_call.1} parent=5 // pred_fallthru
        _
    $region6: #{tpu_custom_call.1} parent=1 // loop_footer
      %s13 = sadd.s32 1, %s9
    $region7: #{tpu_custom_call.1} parent=1 // loop_footer_branch
      %8 = sbr.rel target = $region3
    $region8: #{tpu_custom_call.1} parent=1 // loop_exit
      _
    %288 = vsyncpa [#allocation3], 1
    %s289 = scalar_lea.sflag [#allocation3], 1
    %290 = vsyncpa %s289, 1

</llo_original>
